<compile_context>
chip_gen: v7x
topology: tpu7x:2x2x1
jax: 0.10.0
libtpu: 0.0.40
codegen_flags: <defaults>
</compile_context>

<pallas_src>
import functools

import jax
import jax.numpy as jnp
from jax import lax
from jax.experimental import pallas as pl
from jax.experimental.pallas import tpu as pltpu

LANES = 128
SUBLANES = 8
CHUNK_ROWS = 64                  # inner-loop chunk: 64x128 f32 = 8 vregs per operand
DEFAULT_MAX_BLOCK_ROWS = 4096    # (4096,128) f32 tile = 2 MiB / input / pipeline buffer


def _max_block_rows():
    # v7x has ~3.2 TB/s per-TC HBM, so the ~0.35us per-step overhead is relatively
    # expensive: use 4 MiB/input tiles there (24 MiB double-buffered, < 64 MiB physical).
    try:
        kind = jax.devices()[0].device_kind.lower()
    except Exception:
        return DEFAULT_MAX_BLOCK_ROWS
    if "v7" in kind or "7x" in kind:
        return 8192
    return DEFAULT_MAX_BLOCK_ROWS


def _round_up(x, m):
    return ((x + m - 1) // m) * m


def _block_partial_sum(x_ref, y_ref, w_ref, *, block_rows, chunk_rows, mask_rem):
    """(8,128) f32 partial sum of loss*weight over this block.

    mask_rem: None -> every element in the block is valid (hot path, no iota/where).
              int  -> only block-local flat indices < mask_rem are valid (last block).
    """
    n_chunks = block_rows // chunk_rows

    def body(c, acc):
        if isinstance(c, int):
            start = c * chunk_rows
        else:
            start = pl.multiple_of(c * chunk_rows, chunk_rows)

        x = x_ref[pl.ds(start, chunk_rows), :].astype(jnp.float32)
        y = y_ref[pl.ds(start, chunk_rows), :].astype(jnp.float32)
        w = w_ref[pl.ds(start, chunk_rows), :].astype(jnp.float32)

        # Numerically stable BCE-with-logits (matches torch.nn.BCEWithLogitsLoss):
        #   max(x, 0) - x*y + log(1 + exp(-|x|))
        loss = jnp.maximum(x, 0.0) - x * y + jnp.log1p(jnp.exp(-jnp.abs(x)))
        lw = loss * w

        if mask_rem is not None:
            # Block-local flat index vs. trace-time remainder (fits easily in int32).
            # Applied AFTER the loss with jnp.where so edge-block garbage / padding
            # cannot propagate NaN/Inf into the sum.
            row = lax.broadcasted_iota(jnp.int32, (chunk_rows, LANES), 0)
            col = lax.broadcasted_iota(jnp.int32, (chunk_rows, LANES), 1)
            lidx = (start + row) * LANES + col
            lw = jnp.where(lidx < mask_rem, lw, 0.0)

        # Pure-VPU partial reduction onto one (8,128) vreg-shaped slab
        # (elementwise vreg adds only, no cross-lane / cross-sublane movement).
        return acc + lw.reshape(chunk_rows // SUBLANES, SUBLANES, LANES).sum(axis=0)

    init = jnp.zeros((SUBLANES, LANES), jnp.float32)
    if n_chunks == 1:
        return body(0, init)
    return lax.fori_loop(0, n_chunks, body, init, unroll=2)


def _bce_weighted_partial_kernel(x_ref, y_ref, w_ref, out_ref, *,
                                 block_rows, chunk_rows, last_block_rem):
    if last_block_rem is None:
        # Grid exactly covers the data: no masking anywhere.
        out_ref[...] = _block_partial_sum(
            x_ref, y_ref, w_ref, block_rows=block_rows, chunk_rows=chunk_rows,
            mask_rem=None).reshape(1, SUBLANES, LANES)
    else:
        i = pl.program_id(0)
        last = pl.num_programs(0) - 1

        @pl.when(i != last)
        def _():
            out_ref[...] = _block_partial_sum(
                x_ref, y_ref, w_ref, block_rows=block_rows, chunk_rows=chunk_rows,
                mask_rem=None).reshape(1, SUBLANES, LANES)

        @pl.when(i == last)
        def _():
            out_ref[...] = _block_partial_sum(
                x_ref, y_ref, w_ref, block_rows=block_rows, chunk_rows=chunk_rows,
                mask_rem=last_block_rem).reshape(1, SUBLANES, LANES)


def bce_with_logits_pixelwise_weighted(output, target, pixel_wise_weight):
    assert output.shape == target.shape == pixel_wise_weight.shape
    total = int(output.size)
    tile_elems = SUBLANES * LANES  # 1024

    pad = (-total) % tile_elems  # pads only if total isn't a multiple of 1024 (rare path)

    def flat(a):
        a = jnp.ravel(a)          # keep original dtype; the kernel casts per chunk
        if pad:
            a = jnp.pad(a, (0, pad))
        return a.reshape(-1, LANES)

    x2d = flat(output)
    y2d = flat(target)
    w2d = flat(pixel_wise_weight)

    n_rows = x2d.shape[0]                     # multiple of SUBLANES by construction
    max_block_rows = _max_block_rows()

    # Guarantee >= 2 grid blocks whenever there are >= 2 row-tiles so both of v7x's
    # TensorCores (dimension_semantics="parallel") get a share of the HBM streaming.
    if n_rows >= 2 * SUBLANES:
        n_target_blocks = max(2, pl.cdiv(n_rows, max_block_rows))
    else:
        n_target_blocks = 1
    block_rows = min(max_block_rows,
                     _round_up(pl.cdiv(n_rows, n_target_blocks), SUBLANES))
    num_blocks = pl.cdiv(n_rows, block_rows)

    chunk_rows = CHUNK_ROWS if block_rows % CHUNK_ROWS == 0 else SUBLANES

    # Masking is needed only when the grid over-covers the true element count
    # (lane padding and/or a ragged last block); it then applies to the LAST block only.
    covered = num_blocks * block_rows * LANES
    if covered == total:
        last_block_rem = None
    else:
        last_block_rem = total - (num_blocks - 1) * block_rows * LANES

    kernel = functools.partial(
        _bce_weighted_partial_kernel,
        block_rows=block_rows, chunk_rows=chunk_rows, last_block_rem=last_block_rem)

    in_itemsize = (output.dtype.itemsize + target.dtype.itemsize
                   + pixel_wise_weight.dtype.itemsize)

    # Double-buffered input tiles + output block; ~2x headroom for in-kernel chunked
    # intermediates, capped well under v7x's 64 MiB physical VMEM.
    footprint = 2 * block_rows * LANES * in_itemsize + 2 * SUBLANES * LANES * 4
    vmem_limit = int(min(max(2 * footprint, 16 * 1024 * 1024), 48 * 1024 * 1024))

    cost = pl.CostEstimate(
        flops=9 * total,
        transcendentals=2 * total,
        bytes_accessed=total * in_itemsize + num_blocks * SUBLANES * LANES * 4,
    )

    def _in_spec():
        return pl.BlockSpec((block_rows, LANES), lambda i: (i, 0))

    partials = pl.pallas_call(
        kernel,
        out_shape=jax.ShapeDtypeStruct((num_blocks, SUBLANES, LANES), jnp.float32),
        grid_spec=pltpu.PrefetchScalarGridSpec(
            num_scalar_prefetch=0,
            grid=(num_blocks,),
            in_specs=[_in_spec(), _in_spec(), _in_spec()],
            out_specs=pl.BlockSpec((1, SUBLANES, LANES), lambda i: (i, 0, 0)),
        ),
        compiler_params=pltpu.CompilerParams(
            dimension_semantics=("parallel",),
            vmem_limit_bytes=vmem_limit,
        ),
        cost_estimate=cost,
    )(x2d, y2d, w2d)

    # Tiny final reduction + mean scaling in plain JAX.
    return jnp.sum(partials) * jnp.float32(1.0 / float(total))


def _reference(output, target, pixel_wise_weight):
    x = output.astype(jnp.float32)
    y = target.astype(jnp.float32)
    w = pixel_wise_weight.astype(jnp.float32)
    loss = jnp.maximum(x, 0.0) - x * y + jnp.log1p(jnp.exp(-jnp.abs(x)))
    return jnp.mean(loss * w)


if __name__ == "__main__":
    key = jax.random.PRNGKey(0)
    k1, k2, k3 = jax.random.split(key, 3)

    # NCHW, small shapes: batch=2, channels=4, spatial=16x16
    shape = (2, 4, 16, 16)
    output = jax.random.normal(k1, shape, dtype=jnp.float32) * 2.0
    target = (jax.random.uniform(k2, shape) > 0.5).astype(jnp.float32)
    pixel_wise_weight = jax.random.uniform(k3, shape, dtype=jnp.float32)

    got = jax.block_until_ready(
        bce_with_logits_pixelwise_weighted(output, target, pixel_wise_weight)
    )
    want = _reference(output, target, pixel_wise_weight)

    assert jnp.allclose(got, want, rtol=1e-5, atol=1e-6), (got, want)
    print("KERNEL_OK")
</pallas_src>

<mosaic_0001>
module attributes {stable_mosaic.version = 11 : i64} {
  func.func @_bce_weighted_partial_kernel(%arg0: i32, %arg1: memref<8x128xf32, #tpu.memory_space<vmem>>, %arg2: memref<8x128xf32, #tpu.memory_space<vmem>>, %arg3: memref<8x128xf32, #tpu.memory_space<vmem>>, %arg4: memref<1x8x128xf32, #tpu.memory_space<vmem>>) attributes {dimension_semantics = [#tpu.dimension_semantics<parallel>], iteration_bounds = array<i64: 2>, scalar_prefetch = 0 : i64, scratch_operands = 0 : i64, tpu.core_type = #tpu.core_type<tc>, window_params = [{transform_indices = @transform_0, window_bounds = array<i64: 8, 128>}, {transform_indices = @transform_1, window_bounds = array<i64: 8, 128>}, {transform_indices = @transform_2, window_bounds = array<i64: 8, 128>}, {transform_indices = @transform_3, window_bounds = array<i64: 1, 8, 128>}]} {
    %cst = arith.constant 0.000000e+00 : f32
    %0 = vector.broadcast %cst : f32 to vector<8x128xf32>
    %c0 = arith.constant 0 : index
    %c0_0 = arith.constant 0 : index
    %1 = vector.load %arg1[%c0, %c0_0] : memref<8x128xf32, #tpu.memory_space<vmem>>, vector<8x128xf32>
    %c0_1 = arith.constant 0 : index
    %c0_2 = arith.constant 0 : index
    %2 = vector.load %arg2[%c0_1, %c0_2] : memref<8x128xf32, #tpu.memory_space<vmem>>, vector<8x128xf32>
    %c0_3 = arith.constant 0 : index
    %c0_4 = arith.constant 0 : index
    %3 = vector.load %arg3[%c0_3, %c0_4] : memref<8x128xf32, #tpu.memory_space<vmem>>, vector<8x128xf32>
    %cst_5 = arith.constant 0.000000e+00 : f32
    %4 = vector.broadcast %cst_5 : f32 to vector<8x128xf32>
    %5 = arith.maximumf %1, %4 : vector<8x128xf32>
    %6 = arith.mulf %1, %2 : vector<8x128xf32>
    %7 = arith.subf %5, %6 : vector<8x128xf32>
    %8 = math.absf %1 : vector<8x128xf32>
    %cst_6 = arith.constant 0.000000e+00 : f32
    %9 = vector.broadcast %cst_6 : f32 to vector<8x128xf32>
    %10 = arith.subf %9, %8 : vector<8x128xf32>
    %11 = math.exp %10 : vector<8x128xf32>
    %12 = math.log1p %11 : vector<8x128xf32>
    %13 = arith.addf %7, %12 : vector<8x128xf32>
    %14 = arith.mulf %13, %3 : vector<8x128xf32>
    %15 = vector.shape_cast %14 : vector<8x128xf32> to vector<1x8x128xf32>
    %cst_7 = arith.constant dense<0.000000e+00> : vector<8x128xf32>
    %16 = vector.multi_reduction <add>, %15, %cst_7 [0] : vector<1x8x128xf32> to vector<8x128xf32>
    %17 = arith.addf %0, %16 : vector<8x128xf32>
    %18 = vector.shape_cast %17 : vector<8x128xf32> to vector<1x8x128xf32>
    %c0_8 = arith.constant 0 : index
    %c0_9 = arith.constant 0 : index
    %c0_10 = arith.constant 0 : index
    %19 = vector.load %arg4[%c0_8, %c0_9, %c0_10] : memref<1x8x128xf32, #tpu.memory_space<vmem>>, vector<1x8x128xf32>
    tpu.vector_store %arg4[%c0_8, %c0_9, %c0_10], %18 {strides = array<i32>} : memref<1x8x128xf32, #tpu.memory_space<vmem>>, vector<1x8x128xf32>,
    return
  }
  func.func @transform_0(%arg0: i32) -> (i32, i32) {
    %c0_i32 = arith.constant 0 : i32
    %c0_i32_0 = arith.constant 0 : i32
    return %arg0, %c0_i32 : i32, i32
  }
  func.func @transform_1(%arg0: i32) -> (i32, i32) {
    %c0_i32 = arith.constant 0 : i32
    %c0_i32_0 = arith.constant 0 : i32
    return %arg0, %c0_i32 : i32, i32
  }
  func.func @transform_2(%arg0: i32) -> (i32, i32) {
    %c0_i32 = arith.constant 0 : i32
    %c0_i32_0 = arith.constant 0 : i32
    return %arg0, %c0_i32 : i32, i32
  }
  func.func @transform_3(%arg0: i32) -> (i32, i32, i32) {
    %c0_i32 = arith.constant 0 : i32
    %c0_i32_0 = arith.constant 0 : i32
    %c0_i32_1 = arith.constant 0 : i32
    return %arg0, %c0_i32, %c0_i32_0 : i32, i32, i32
  }
}

</mosaic_0001>

<llo_original>
// kernel: tpu_custom_call.1
$region0: #{tpu_custom_call.1}
  #allocation0 [shape = 'u32[]', space=smem, size = 0x4, offset = 0x4, fixed_abs, tag = 'smem constant byte address 0x4 - core index']
  #allocation1 [shape = 'u32[144,128]{1,0:T(1,128)}', space=vmem, size = 0x12000, scoped, tag = 'internal scratch']
  %s0 = inlined_call_operand.hbm [shape: f32[16,128], index: 0, kind: input, shape index: {}]
  %s1 = inlined_call_operand.hbm [shape: f32[16,128], index: 1, kind: input, shape index: {}]
  %s2 = inlined_call_operand.hbm [shape: f32[16,128], index: 2, kind: input, shape index: {}]
  %s3 = inlined_call_operand.hbm [shape: f32[2,8,128], index: 3, kind: output, shape index: {}]
  %s4 = sld [smem:[#allocation0]]
  $region57: #{tpu_custom_call.1} parent=0
    _
  %s6 = ssub.s32 1, %s4
  %s7 = scalar_select 0, %s6, %s4
  $region1: #{tpu_custom_call.1} parent=0
    #allocation2 [shape = 'u8[8192]{0}', space=vmem, size = 0x2000, scoped, tag = 'input window, operand 0']
    #allocation3 [shape = 's32[2]{0}', space=sflag, size = 0x8, scoped, tag = 'scoped memory for tpu_custom_call.1']
    #allocation4 [shape = 's32[2]{0}', space=sflag, size = 0x8, scoped, tag = 'scoped memory for tpu_custom_call.1']
    #allocation5 [shape = 'u8[8192]{0}', space=vmem, size = 0x2000, scoped, tag = 'input window, operand 1']
    #allocation6 [shape = 's32[2]{0}', space=sflag, size = 0x8, scoped, tag = 'scoped memory for tpu_custom_call.1']
    #allocation7 [shape = 'u8[8192]{0}', space=vmem, size = 0x2000, scoped, tag = 'input window, operand 2']
    #allocation8 [shape = 'u8[8192]{0}', space=vmem, size = 0x2000, scoped, tag = 'output window, operand 0']
    %8 = vsyncpa [#allocation3], 0
    %s9 = scalar_lea.sflag [#allocation3], 1
    %10 = vsyncpa %s9, 0
    %11 = vsyncpa [#allocation6], 0
    %s12 = scalar_lea.sflag [#allocation6], 1
    %13 = vsyncpa %s12, 0
    %14 = vsyncpa [#allocation4], 0
    %s15 = scalar_lea.sflag [#allocation4], 1
    %16 = vsyncpa %s15, 0
    loop: start=0, step=1, limit=4
    $region2: #{tpu_custom_call.1} parent=1 // loop_pre_header
      _
    $region3: #{tpu_custom_call.1} parent=1 // loop_header
      %s18 = sphi 0, %s22
      %p19 = scmp.ge.s32.totalorder %s18, 4
      %s28 = sphi 0, %s30
      %s31 = sphi 0, %s28
      %s32 = sphi 0, %s31
      %s48 = sphi 0, %s32
      %s54 = sphi 0, %s56
      %s57 = sphi 0, %s54
      %s58 = sphi 0, %s57
      %s74 = sphi 0, %s58
      %s80 = sphi 0, %s82
      %s83 = sphi 0, %s80
      %s84 = sphi 0, %s83
      %s100 = sphi 0, %s84
      %s106 = sphi 0, %s108
      %s109 = sphi 0, %s106
      %s110 = sphi 0, %s109
      %s126 = sphi 0, %s110
    $region4: #{tpu_custom_call.1} parent=1 // loop_header_branch
      %21 = sbr.rel (%p19) target = $region8
    $region5: #{tpu_custom_call.1} parent=1 // loop_body
      %s23 = ssub.s32 %s18, 1
      %s24 = ssub.s32 %s18, 2
      %s25 = sadd.s32 %s18, 1
      %s26 = ssub.s32 %s18, %s25
      %p27 = scmp.eq.s32.totalorder %s26, 0
      %s29 = sadd.s32 %s28, 1
      %s30 = scalar_select %p27, %s28, %s29
      %p33 = pneg %p27
      %p34 = scmp.eq.s32.totalorder %s18, 1
      %p35 = por %p33, %p34
      %p36 = scmp.ne.s32.totalorder %s28, %s31
      %p37 = scmp.eq.s32.totalorder %s18, 0
      %p38 = por %p36, %p37
      %p39 = scmp.ne.s32.totalorder %s28, %s31
      %p40 = scmp.eq.s32.totalorder %s23, 1
      %p41 = por %p39, %p40
      %p42 = scmp.ne.s32.totalorder %s31, %s32
      %p43 = scmp.eq.s32.totalorder %s23, 0
      %p44 = por %p42, %p43
      %p45 = scmp.ne.s32.totalorder %s31, %s32
      %p46 = scmp.eq.s32.totalorder %s24, 1
      %p47 = por %p45, %p46
      %p49 = scmp.ne.s32.totalorder %s32, %s48
      %p50 = scmp.eq.s32.totalorder %s24, 0
      %p51 = por %p49, %p50
      %s52 = ssub.s32 %s18, %s25
      %p53 = scmp.eq.s32.totalorder %s52, 0
      %s55 = sadd.s32 %s54, 1
      %s56 = scalar_select %p53, %s54, %s55
      %p59 = pneg %p53
      %p60 = scmp.eq.s32.totalorder %s18, 1
      %p61 = por %p59, %p60
      %p62 = scmp.ne.s32.totalorder %s54, %s57
      %p63 = scmp.eq.s32.totalorder %s18, 0
      %p64 = por %p62, %p63
      %p65 = scmp.ne.s32.totalorder %s54, %s57
      %p66 = scmp.eq.s32.totalorder %s23, 1
      %p67 = por %p65, %p66
      %p68 = scmp.ne.s32.totalorder %s57, %s58
      %p69 = scmp.eq.s32.totalorder %s23, 0
      %p70 = por %p68, %p69
      %p71 = scmp.ne.s32.totalorder %s57, %s58
      %p72 = scmp.eq.s32.totalorder %s24, 1
      %p73 = por %p71, %p72
      %p75 = scmp.ne.s32.totalorder %s58, %s74
      %p76 = scmp.eq.s32.totalorder %s24, 0
      %p77 = por %p75, %p76
      %s78 = ssub.s32 %s18, %s25
      %p79 = scmp.eq.s32.totalorder %s78, 0
      %s81 = sadd.s32 %s80, 1
      %s82 = scalar_select %p79, %s80, %s81
      %p85 = pneg %p79
      %p86 = scmp.eq.s32.totalorder %s18, 1
      %p87 = por %p85, %p86
      %p88 = scmp.ne.s32.totalorder %s80, %s83
      %p89 = scmp.eq.s32.totalorder %s18, 0
      %p90 = por %p88, %p89
      %p91 = scmp.ne.s32.totalorder %s80, %s83
      %p92 = scmp.eq.s32.totalorder %s23, 1
      %p93 = por %p91, %p92
      %p94 = scmp.ne.s32.totalorder %s83, %s84
      %p95 = scmp.eq.s32.totalorder %s23, 0
      %p96 = por %p94, %p95
      %p97 = scmp.ne.s32.totalorder %s83, %s84
      %p98 = scmp.eq.s32.totalorder %s24, 1
      %p99 = por %p97, %p98
      %p101 = scmp.ne.s32.totalorder %s84, %s100
      %p102 = scmp.eq.s32.totalorder %s24, 0
      %p103 = por %p101, %p102
      %s104 = ssub.s32 %s18, %s25
      %p105 = scmp.eq.s32.totalorder %s104, 0
      %s107 = sadd.s32 %s106, 1
      %s108 = scalar_select %p105, %s106, %s107
      %p111 = pneg %p105
      %p112 = scmp.eq.s32.totalorder %s18, 1
      %p113 = por %p111, %p112
      %p114 = scmp.ne.s32.totalorder %s106, %s109
      %p115 = scmp.eq.s32.totalorder %s18, 0
      %p116 = por %p114, %p115
      %p117 = scmp.ne.s32.totalorder %s106, %s109
      %p118 = scmp.eq.s32.totalorder %s23, 1
      %p119 = por %p117, %p118
      %p120 = scmp.ne.s32.totalorder %s109, %s110
      %p121 = scmp.eq.s32.totalorder %s23, 0
      %p122 = por %p120, %p121
      %p123 = scmp.ne.s32.totalorder %s109, %s110
      %p124 = scmp.eq.s32.totalorder %s24, 1
      %p125 = por %p123, %p124
      %p127 = scmp.ne.s32.totalorder %s110, %s126
      %p128 = scmp.eq.s32.totalorder %s24, 0
      %p129 = por %p127, %p128
      %p130 = scmp.le.s32.totalorder 1, %s18
      %p131 = scmp.lt.s32.totalorder %s18, 3
      %p132 = pnand %p130, %p131
      %p133 = pneg %p132
      // Predicated region
      $region9: #{tpu_custom_call.1} parent=5 // pred_check
        _
      $region10: #{tpu_custom_call.1} parent=5 // pred_check_branch
        %135 = sbr.rel (%p132) target = $region12
      $region11: #{tpu_custom_call.1} parent=5 // pred_region
        %s136 = ssub.s32 %s18, 1
      $region12: #{tpu_custom_call.1} parent=5 // pred_fallthru
        _
      %p137 = scmp.lt.s32.totalorder %s18, 2
      // Predicated region
      $region13: #{tpu_custom_call.1} parent=5 // pred_check
        %p138 = pneg %p137
      $region14: #{tpu_custom_call.1} parent=5 // pred_check_branch
        %140 = sbr.rel (%p138) target = $region16
      $region15: #{tpu_custom_call.1} parent=5 // pred_region
        // Predicated region
        $region17: #{tpu_custom_call.1} parent=15 // pred_check
          %p141 = pneg %p38
        $region18: #{tpu_custom_call.1} parent=15 // pred_check_branch
          %143 = sbr.rel (%p141) target = $region20
        $region19: #{tpu_custom_call.1} parent=15 // pred_region
          %s144 = sand.u32 %s28, 1
          %s145 = scalar_lea.sflag [#allocation3], %s144
          %s146 = sand.u32 %s28, 1
          %s147 = smul.addr %s146, 8
          %s148 = scalar_lea.vmem [#allocation2], %s147
          %s150 = ssub.s32 128, 128
          %151 = vsyncadd %s145, %s150
          %s152 = smul.addr %s18, 128
          %s153 = scalar_lea.hbm %s0, %s152
          %s155 = sshll.u32 %s148, 4
          %s156 = int_to_ptr.vmem [resolvable:$true] %s155
          %158 = dma.hbm_to_vmem [thread:$0]  %s153, 128, %s156, %s145
        $region20: #{tpu_custom_call.1} parent=15 // pred_fallthru
          _
        // Predicated region
        $region21: #{tpu_custom_call.1} parent=15 // pred_check
          %p159 = pneg %p64
        $region22: #{tpu_custom_call.1} parent=15 // pred_check_branch
          %161 = sbr.rel (%p159) target = $region24
        $region23: #{tpu_custom_call.1} parent=15 // pred_region
          %s162 = sand.u32 %s18, 1
          %s163 = scalar_lea.sflag [#allocation6], %s162
          %s164 = sand.u32 %s54, 1
          %s165 = smul.addr %s164, 8
          %s166 = scalar_lea.vmem [#allocation5], %s165
          %s168 = ssub.s32 128, 128
          %169 = vsyncadd %s163, %s168
          %s170 = smul.addr %s18, 128
          %s171 = scalar_lea.hbm %s1, %s170
          %s173 = sshll.u32 %s166, 4
          %s174 = int_to_ptr.vmem [resolvable:$true] %s173
          %176 = dma.hbm_to_vmem [thread:$0]  %s171, 128, %s174, %s163
        $region24: #{tpu_custom_call.1} parent=15 // pred_fallthru
          _
        // Predicated region
        $region25: #{tpu_custom_call.1} parent=15 // pred_check
          %p177 = pneg %p90
        $region26: #{tpu_custom_call.1} parent=15 // pred_check_branch
          %179 = sbr.rel (%p177) target = $region28
        $region27: #{tpu_custom_call.1} parent=15 // pred_region
          %s180 = sand.u32 %s18, 1
          %s181 = scalar_lea.sflag [#allocation6], %s180
          %s182 = sand.u32 %s80, 1
          %s183 = smul.addr %s182, 8
          %s184 = scalar_lea.vmem [#allocation7], %s183
          %s186 = ssub.s32 128, 128
          %187 = vsyncadd %s181, %s186
          %s188 = smul.addr %s18, 128
          %s189 = scalar_lea.hbm %s2, %s188
          %s191 = sshll.u32 %s184, 4
          %s192 = int_to_ptr.vmem [resolvable:$true] %s191
          %194 = dma.hbm_to_vmem [thread:$0]  %s189, 128, %s192, %s181
        $region28: #{tpu_custom_call.1} parent=15 // pred_fallthru
          _
      $region16: #{tpu_custom_call.1} parent=5 // pred_fallthru
        _
      %p195 = scmp.le.s32.totalorder 1, %s18
      %p196 = scmp.lt.s32.totalorder %s18, 3
      %p197 = pnand %p195, %p196
      %p198 = pneg %p197
      // Predicated region
      $region29: #{tpu_custom_call.1} parent=5 // pred_check
        _
      $region30: #{tpu_custom_call.1} parent=5 // pred_check_branch
        %200 = sbr.rel (%p197) target = $region32
      $region31: #{tpu_custom_call.1} parent=5 // pred_region
        %s201 = ssub.s32 %s18, 1
        %s202 = sand.u32 %s31, 1
        %s203 = scalar_lea.sflag [#allocation3], %s202
        %s204 = sand.u32 %s31, 1
        %s205 = smul.addr %s204, 8
        %s206 = scalar_lea.vmem [#allocation2], %s205
        // Predicated region
        $region33: #{tpu_custom_call.1} parent=31 // pred_check
          %p207 = pneg %p44
        $region34: #{tpu_custom_call.1} parent=31 // pred_check_branch
          %209 = sbr.rel (%p207) target = $region36
        $region35: #{tpu_custom_call.1} parent=31 // pred_region
          %210 = dma.done %s203, 128
        $region36: #{tpu_custom_call.1} parent=31 // pred_fallthru
          _
        %s211 = sand.u32 %s23, 1
        %s212 = scalar_lea.sflag [#allocation6], %s211
        %s213 = sand.u32 %s57, 1
        %s214 = smul.addr %s213, 8
        %s215 = scalar_lea.vmem [#allocation5], %s214
        // Predicated region
        $region37: #{tpu_custom_call.1} parent=31 // pred_check
          %p216 = pneg %p70
        $region38: #{tpu_custom_call.1} parent=31 // pred_check_branch
          %218 = sbr.rel (%p216) target = $region40
        $region39: #{tpu_custom_call.1} parent=31 // pred_region
          %219 = dma.done %s212, 128
        $region40: #{tpu_custom_call.1} parent=31 // pred_fallthru
          _
        %s220 = sand.u32 %s23, 1
        %s221 = scalar_lea.sflag [#allocation6], %s220
        %s222 = sand.u32 %s83, 1
        %s223 = smul.addr %s222, 8
        %s224 = scalar_lea.vmem [#allocation7], %s223
        // Predicated region
        $region41: #{tpu_custom_call.1} parent=31 // pred_check
          %p225 = pneg %p96
        $region42: #{tpu_custom_call.1} parent=31 // pred_check_branch
          %227 = sbr.rel (%p225) target = $region44
        $region43: #{tpu_custom_call.1} parent=31 // pred_region
          %228 = dma.done %s221, 128
        $region44: #{tpu_custom_call.1} parent=31 // pred_fallthru
          _
        %s229 = sand.u32 %s31, 1
        %s230 = scalar_lea.sflag [#allocation3], %s229
        %s231 = sand.u32 %s31, 1
        %s232 = smul.addr %s231, 8
        %s233 = scalar_lea.vmem [#allocation2], %s232
        %p234 = pneg %p44
        %p235 = pneg %p41
        %s236 = sand.u32 %s23, 1
        %s237 = scalar_lea.sflag [#allocation6], %s236
        %s238 = sand.u32 %s57, 1
        %s239 = smul.addr %s238, 8
        %s240 = scalar_lea.vmem [#allocation5], %s239
        %p241 = pneg %p70
        %p242 = pneg %p67
        %s243 = sand.u32 %s23, 1
        %s244 = scalar_lea.sflag [#allocation6], %s243
        %s245 = sand.u32 %s83, 1
        %s246 = smul.addr %s245, 8
        %s247 = scalar_lea.vmem [#allocation7], %s246
        %p248 = pneg %p96
        %p249 = pneg %p93
        %p250 = pneg %p122
        %p251 = pneg %p119
        %s252 = sand.u32 %s109, 1
        %s253 = scalar_lea.sflag [#allocation4], %s252
        %s254 = sand.u32 %s109, 1
        %s255 = smul.addr %s254, 8
        %s256 = scalar_lea.vmem [#allocation8], %s255
        %v257 = vld [vmem:[%s206] sm:$0xff]
        %v258 = vld [vmem:[%s215] sm:$0xff]
        %v259 = vld [vmem:[%s224] sm:$0xff]
        %v260 = vmax.f32 %v257, 0.0
        %v261 = vmul.f32 %v257, %v258
        %v262 = vsub.f32 %v260, %v261
        %v263 = vand.u32 2147483647, %v257
        %v264 = vsub.f32 0.0, %v263
        %v265 = vmul.f32 %v264, 1.442695
        %v266 = vpow.pop %v265
        %v267 = vadd.f32 %v266, 1.0
        %v268 = vlog2.pop %v267
        %v269 = vmul.f32 %v268, 0.6931472
        %v270 = vmul.f32 -0.5, %v266
        %v271 = vadd.f32 %v270, 1.0
        %v272 = vmul.f32 %v271, %v266
        %v273 = vand.u32 2147483647, %v266
        %vm274 = vcmp.lt.f32.partialorder %v273, 0.0004427343
        %v275 = vsel %vm274, %v272, %v269
        %v276 = vadd.f32 %v262, %v275
        %v277 = vmul.f32 %v276, %v259
        %v278 = vadd.f32 %v277, 0.0
        %v279 = vadd.f32 %v278, 0.0
        %280 = vst [vmem:[%s256] sm:$0xff] %v279
        %s281 = sand.u32 %s109, 1
        %s282 = scalar_lea.sflag [#allocation4], %s281
        %s283 = sand.u32 %s109, 1
        %s284 = smul.addr %s283, 8
        %s285 = scalar_lea.vmem [#allocation8], %s284
        // Predicated region
        $region45: #{tpu_custom_call.1} parent=31 // pred_check
          %p286 = pneg %p119
        $region46: #{tpu_custom_call.1} parent=31 // pred_check_branch
          %288 = sbr.rel (%p286) target = $region48
        $region47: #{tpu_custom_call.1} parent=31 // pred_region
          %s290 = ssub.s32 128, 128
          %291 = vsyncadd %s282, %s290
          %s292 = smul.addr %s23, 128
          %s293 = scalar_lea.hbm %s3, %s292
          %s295 = sshll.u32 %s285, 4
          %s296 = int_to_ptr.vmem [resolvable:$true] %s295
          %298 = dma.vmem_to_hbm [thread:$0]  %s296, 128, %s293, %s282
        $region48: #{tpu_custom_call.1} parent=31 // pred_fallthru
          _
      $region32: #{tpu_custom_call.1} parent=5 // pred_fallthru
        _
      %p299 = scmp.le.s32.totalorder 2, %s18
      // Predicated region
      $region49: #{tpu_custom_call.1} parent=5 // pred_check
        %p300 = pneg %p299
      $region50: #{tpu_custom_call.1} parent=5 // pred_check_branch
        %302 = sbr.rel (%p300) target = $region52
      $region51: #{tpu_custom_call.1} parent=5 // pred_region
        %s303 = ssub.s32 %s18, 2
        // Predicated region
        $region53: #{tpu_custom_call.1} parent=51 // pred_check
          %p304 = pneg %p125
        $region54: #{tpu_custom_call.1} parent=51 // pred_check_branch
          %306 = sbr.rel (%p304) target = $region56
        $region55: #{tpu_custom_call.1} parent=51 // pred_region
          %s307 = sand.u32 %s110, 1
          %s308 = scalar_lea.sflag [#allocation4], %s307
          %s309 = sand.u32 %s110, 1
          %s310 = smul.addr %s309, 8
          %s311 = scalar_lea.vmem [#allocation8], %s310
          %312 = dma.done %s308, 128
        $region56: #{tpu_custom_call.1} parent=51 // pred_fallthru
          _
      $region52: #{tpu_custom_call.1} parent=5 // pred_fallthru
        _
    $region6: #{tpu_custom_call.1} parent=1 // loop_footer
      %s22 = sadd.s32 1, %s18
    $region7: #{tpu_custom_call.1} parent=1 // loop_footer_branch
      %17 = sbr.rel target = $region3
    $region8: #{tpu_custom_call.1} parent=1 // loop_exit
      _
    %313 = vsyncpa [#allocation3], 1
    %s314 = scalar_lea.sflag [#allocation3], 1
    %315 = vsyncpa %s314, 1
    %316 = vsyncpa [#allocation6], 1
    %s317 = scalar_lea.sflag [#allocation6], 1
    %318 = vsyncpa %s317, 1
    %319 = vsyncpa [#allocation4], 1
    %s320 = scalar_lea.sflag [#allocation4], 1
    %321 = vsyncpa %s320, 1

</llo_original>
